<compile_context>
chip_gen: v6e
topology: v6e:2x2x1
jax: 0.10.0
libtpu: 0.0.40
codegen_flags: <defaults>
</compile_context>

<pallas_src>
import functools
import math

import jax
import jax.numpy as jnp
from jax.experimental import pallas as pl
from jax.experimental.pallas import tpu as pltpu


def _round_up(n, m):
    return ((n + m - 1) // m) * m


def _pick_h_chunk(H, target=512):
    """Largest multiple of 128 that divides H and is <= target (fallback: H)."""
    for k in range(min(target, H) // 128, 0, -1):
        c = k * 128
        if H % c == 0:
            return c
    return H


def _erf(z):
    """Abramowitz & Stegun 7.1.26 erf approximation, |err| <= 1.5e-7 (f32-exact).

    Uses only exp / mul / add / select so the transcendental goes to the EUP
    slot and we never rely on an `erf` primitive lowering in Mosaic.
    """
    a1, a2, a3, a4, a5 = (0.254829592, -0.284496736, 1.421413741,
                          -1.453152027, 1.061405429)
    p = 0.3275911
    az = jnp.abs(z)
    t = 1.0 / (1.0 + p * az)
    poly = t * (a1 + t * (a2 + t * (a3 + t * (a4 + t * a5))))
    e = 1.0 - poly * jnp.exp(-az * az)
    return jnp.where(z < 0.0, -e, e)


def _gelu(h, approximate):
    if approximate:
        # tanh form: transcendental on the otherwise-idle EUP slot.
        return jax.nn.gelu(h, approximate=True)
    # exact (erf) form matching torch.nn.GELU() numerics to ~1e-7.
    return 0.5 * h * (1.0 + _erf(h * 0.7071067811865476))


def _ffn_kernel(x_ref, w1_ref, b1_ref, w2_ref, b2_ref, o_ref, *,
                h_chunk, approximate_gelu):
    # x_ref : [TM, D] (native dtype)   w1_ref: [D, H]   b1_ref: [1, H] (f32)
    # w2_ref: [H, D]                   b2_ref: [1, D]   o_ref : [TM, D]
    wdt = w1_ref.dtype
    # In-kernel cast to the MXU compute dtype: free VALU filler under the
    # vmatmul pushes instead of a separate mem-bound XLA pass in the wrapper.
    x = x_ref[...].astype(wdt)
    tm = x.shape[0]
    d = o_ref.shape[-1]
    h_total = w1_ref.shape[-1]

    acc = jnp.zeros((tm, d), jnp.float32)
    # Hidden-dim chunking: GEMM1 chunk -> bias + GELU -> partial GEMM2
    # accumulate.  Keeps the MXU fed while the VPU/EUP do the GELU and bounds
    # the f32 intermediate to TM x h_chunk.  Trip count is static (unrolled).
    for c in range(h_total // h_chunk):
        c0 = c * h_chunk
        h = jnp.dot(x, w1_ref[:, c0:c0 + h_chunk],
                    preferred_element_type=jnp.float32)
        h = h + b1_ref[:, c0:c0 + h_chunk]
        g = _gelu(h, approximate_gelu)
        # Dropout(p=0.0) is the identity (matches the reference module).
        # TODO(synk): stochastic dropout via pltpu.prng_seed / prng_random_bits if p > 0.
        acc = acc + jnp.dot(g.astype(wdt), w2_ref[c0:c0 + h_chunk, :],
                            preferred_element_type=jnp.float32)
    o_ref[...] = (acc + b2_ref[...]).astype(o_ref.dtype)


def feedforward(x, w1, b1, w2, b2, *, block_m=512, compute_dtype=jnp.bfloat16,
                approximate_gelu=False, h_chunk=None):
    """ViT FeedForward: Linear(D->H) -> GELU -> Dropout(0) -> Linear(H->D) -> Dropout(0).

    x: [B, S, D]; w1: [D, H]; b1: [H]; w2: [H, D]; b2: [D].
    Returns [B, S, D] in x.dtype.  Matmuls run in `compute_dtype` on the MXU
    with f32 accumulation; pass compute_dtype=jnp.float32 for exact f32 math.
    x enters the kernel in its native dtype (cast on-chip).  For production,
    store w1/w2 in `compute_dtype` so the wrapper weight casts are no-ops.
    """
    B, S, D = x.shape
    H = w1.shape[1]
    M = B * S
    out_dtype = x.dtype
    cdt = jnp.dtype(compute_dtype) if compute_dtype is not None else jnp.dtype(x.dtype)

    # ---- lane / MXU alignment: pad D, H up to multiples of 128 if needed ----
    Dp, Hp = _round_up(D, 128), _round_up(H, 128)
    x2d = x.reshape(M, D)
    b1v, b2v = b1.reshape(-1), b2.reshape(-1)
    if Dp != D:
        x2d = jnp.pad(x2d, ((0, 0), (0, Dp - D)))
    if (Dp, Hp) != (D, H):
        w1 = jnp.pad(w1, ((0, Dp - D), (0, Hp - H)))
        w2 = jnp.pad(w2, ((0, Hp - H), (0, Dp - D)))
        b1v = jnp.pad(b1v, (0, Hp - H))
        b2v = jnp.pad(b2v, (0, Dp - D))

    # Weight / bias casts (no-ops if already stored in the compute dtype).
    w1c = w1 if w1.dtype == cdt else w1.astype(cdt)
    w2c = w2 if w2.dtype == cdt else w2.astype(cdt)
    b1f = b1v.reshape(1, Hp).astype(jnp.float32)
    b2f = b2v.reshape(1, Dp).astype(jnp.float32)

    if h_chunk is None:
        h_chunk = _pick_h_chunk(Hp)

    # ---- token tile ---------------------------------------------------------
    # Sub-32-bit tiles pack along sublanes in pairs -> keep TM a multiple of 16.
    itemsizes = (jnp.dtype(x.dtype).itemsize, cdt.itemsize,
                 jnp.dtype(out_dtype).itemsize)
    granule = 16 if min(itemsizes) < 4 else 8
    # Guarantee >= 2 grid steps when M allows so the "parallel" axis can shard
    # across v7x's two TensorCores; never exceed the (rounded) token count.
    tm = min(block_m, _round_up(pl.cdiv(M, 2), 256))
    tm = _round_up(tm, granule)
    tm = max(granule, min(tm, _round_up(M, granule)))
    grid = (pl.cdiv(M, tm),)

    # ---- VMEM accounting (matches actual buffer counts, +20% slack) --------
    xb = jnp.dtype(x.dtype).itemsize
    ob = jnp.dtype(out_dtype).itemsize
    wb = cdt.itemsize
    est = (2 * tm * Dp * xb            # x tile, double-buffered by the pipeline
           + 2 * tm * Dp * ob          # out tile, double-buffered
           + Dp * Hp * wb + Hp * 4     # w1 + b1, single-buffered (Buffered(1))
           + Hp * Dp * wb + Dp * 4     # w2 + b2, single-buffered
           + tm * h_chunk * (4 + wb)   # f32 hidden chunk + its compute-dtype cast
           + tm * Dp * 4)              # f32 output accumulator
    try:
        vmem_cap = pltpu.get_tpu_info().vmem_capacity_bytes
    except Exception:                  # conservative fallback (v7x-sized VMEM)
        vmem_cap = 64 << 20
    vmem_budget = int(vmem_cap * 0.85)       # ~110 MiB v5e/v6e, ~54 MiB v7x
    vmem_limit = int(min(max(int(est * 1.2) + (1 << 20), 16 << 20), vmem_budget))
    # TODO(synk): if `est` approaches vmem_budget (very large D/H or f32
    # weights), add a second "arbitrary" grid axis over H with a (tm, Dp) f32
    # scratch accumulator so only one weight slab per matrix is VMEM-resident.

    cost = pl.CostEstimate(
        flops=4 * M * Dp * Hp,                    # two GEMMs
        transcendentals=M * Hp,                   # GELU
        bytes_accessed=(M * Dp * xb + Dp * Hp * wb + Hp * 4
                        + Hp * Dp * wb + Dp * 4 + M * Dp * ob),
    )

    kernel = functools.partial(_ffn_kernel, h_chunk=h_chunk,
                               approximate_gelu=approximate_gelu)
    resident = dict(pipeline_mode=pl.Buffered(1))   # block-invariant -> 1 buffer

    out = pl.pallas_call(
        kernel,
        out_shape=jax.ShapeDtypeStruct((M, Dp), out_dtype),
        grid=grid,
        in_specs=[
            pl.BlockSpec((tm, Dp), lambda i: (i, 0)),              # x   (pipelined)
            pl.BlockSpec((Dp, Hp), lambda i: (0, 0), **resident),  # w1  (resident)
            pl.BlockSpec((1, Hp), lambda i: (0, 0), **resident),   # b1  (resident)
            pl.BlockSpec((Hp, Dp), lambda i: (0, 0), **resident),  # w2  (resident)
            pl.BlockSpec((1, Dp), lambda i: (0, 0), **resident),   # b2  (resident)
        ],
        out_specs=pl.BlockSpec((tm, Dp), lambda i: (i, 0)),
        compiler_params=pltpu.CompilerParams(
            dimension_semantics=("parallel",),
            vmem_limit_bytes=vmem_limit,
        ),
        cost_estimate=cost,
    )(x2d, w1c, b1f, w2c, b2f)

    if Dp != D:
        out = out[:, :D]
    return out.reshape(B, S, D)


def init_params(key, dim, hidden_dim):
    """Deterministic init mimicking nn.Linear default (uniform +-1/sqrt(fan_in))."""
    k1, k2, k3, k4 = jax.random.split(key, 4)
    lim1 = 1.0 / math.sqrt(dim)
    lim2 = 1.0 / math.sqrt(hidden_dim)
    w1 = jax.random.uniform(k1, (dim, hidden_dim), jnp.float32, -lim1, lim1)
    b1 = jax.random.uniform(k2, (hidden_dim,), jnp.float32, -lim1, lim1)
    w2 = jax.random.uniform(k3, (hidden_dim, dim), jnp.float32, -lim2, lim2)
    b2 = jax.random.uniform(k4, (dim,), jnp.float32, -lim2, lim2)
    return w1, b1, w2, b2


if __name__ == "__main__":
    # Small but lane-aligned shapes (multiples of 128 on D / H).
    batch, seq, dim, hidden_dim = 2, 8, 128, 256

    key = jax.random.PRNGKey(0)
    kx, kp = jax.random.split(key)
    x = jax.random.normal(kx, (batch, seq, dim), jnp.float32)
    w1, b1, w2, b2 = init_params(kp, dim, hidden_dim)

    # Pure-JAX references with HIGHEST matmul precision (plain f32 matmuls on
    # TPU default to bf16 passes, which would make the reference the loose one).
    hi = jax.lax.Precision.HIGHEST
    x2 = x.reshape(-1, dim)
    hid = jnp.dot(x2, w1, precision=hi) + b1
    ref_erf = (jnp.dot(jax.nn.gelu(hid, approximate=False), w2, precision=hi)
               + b2).reshape(batch, seq, dim)
    ref_tanh = (jnp.dot(jax.nn.gelu(hid, approximate=True), w2, precision=hi)
                + b2).reshape(batch, seq, dim)

    # 1) Exact f32 compute path, erf GELU (matches torch.nn.GELU()).
    y_f32 = feedforward(x, w1, b1, w2, b2, compute_dtype=jnp.float32)
    jax.block_until_ready(y_f32)
    assert y_f32.shape == (batch, seq, dim)
    assert jnp.allclose(y_f32, ref_erf, atol=1e-4, rtol=1e-4)

    # 2) f32 compute path with tanh (EUP-routed) GELU.
    y_tanh = feedforward(x, w1, b1, w2, b2, compute_dtype=jnp.float32,
                         approximate_gelu=True)
    jax.block_until_ready(y_tanh)
    assert jnp.allclose(y_tanh, ref_tanh, atol=1e-4, rtol=1e-4)

    # 3) Default bf16 MXU path (f32 accumulation): relaxed tolerance.
    y_bf16 = feedforward(x, w1, b1, w2, b2)
    jax.block_until_ready(y_bf16)
    assert y_bf16.shape == (batch, seq, dim)
    assert jnp.allclose(y_bf16, ref_erf, atol=5e-2, rtol=5e-2)

    print("KERNEL_OK")
</pallas_src>

<mosaic_0001>
module attributes {stable_mosaic.version = 11 : i64} {
  func.func @_ffn_kernel(%arg0: i32, %arg1: memref<16x128xf32, #tpu.memory_space<vmem>>, %arg2: memref<128x256xf32, #tpu.memory_space<vmem>>, %arg3: memref<1x256xf32, #tpu.memory_space<vmem>>, %arg4: memref<256x128xf32, #tpu.memory_space<vmem>>, %arg5: memref<1x128xf32, #tpu.memory_space<vmem>>, %arg6: memref<16x128xf32, #tpu.memory_space<vmem>>) attributes {dimension_semantics = [#tpu.dimension_semantics<parallel>], iteration_bounds = array<i64: 1>, scalar_prefetch = 0 : i64, scratch_operands = 0 : i64, tpu.core_type = #tpu.core_type<tc>, window_params = [{transform_indices = @transform_0, window_bounds = array<i64: 16, 128>}, {pipeline_mode = #tpu.pipeline_mode<synchronous>, transform_indices = @transform_1, window_bounds = array<i64: 128, 256>}, {pipeline_mode = #tpu.pipeline_mode<synchronous>, transform_indices = @transform_2, window_bounds = array<i64: 1, 256>}, {pipeline_mode = #tpu.pipeline_mode<synchronous>, transform_indices = @transform_3, window_bounds = array<i64: 256, 128>}, {pipeline_mode = #tpu.pipeline_mode<synchronous>, transform_indices = @transform_4, window_bounds = array<i64: 1, 128>}, {transform_indices = @transform_5, window_bounds = array<i64: 16, 128>}]} {
    %c0 = arith.constant 0 : index
    %c0_0 = arith.constant 0 : index
    %0 = vector.load %arg1[%c0, %c0_0] : memref<16x128xf32, #tpu.memory_space<vmem>>, vector<16x128xf32>
    %cst = arith.constant 0.000000e+00 : f32
    %1 = vector.broadcast %cst : f32 to vector<16x128xf32>
    %c0_1 = arith.constant 0 : index
    %c0_2 = arith.constant 0 : index
    %2 = vector.load %arg2[%c0_1, %c0_2] : memref<128x256xf32, #tpu.memory_space<vmem>>, vector<128x256xf32>
    %cst_3 = arith.constant dense<0.000000e+00> : vector<16x256xf32>
    %3 = tpu.matmul %0, %2, %cst_3 {dimension_numbers = #tpu.dot_dimension_numbers<[1], [0], [0], [1], [0, 0, 1, 1], [], []>} : vector<16x128xf32>, vector<128x256xf32>, vector<16x256xf32> -> vector<16x256xf32>
    %c0_4 = arith.constant 0 : index
    %c0_5 = arith.constant 0 : index
    %4 = vector.load %arg3[%c0_4, %c0_5] : memref<1x256xf32, #tpu.memory_space<vmem>>, vector<1x256xf32>
    %5 = vector.broadcast %4 : vector<1x256xf32> to vector<16x256xf32>
    %6 = arith.addf %3, %5 : vector<16x256xf32>
    %cst_6 = arith.constant 5.000000e-01 : f32
    %7 = vector.broadcast %cst_6 : f32 to vector<16x256xf32>
    %8 = arith.mulf %7, %6 : vector<16x256xf32>
    %cst_7 = arith.constant 0.707106769 : f32
    %9 = vector.broadcast %cst_7 : f32 to vector<16x256xf32>
    %10 = arith.mulf %6, %9 : vector<16x256xf32>
    %11 = math.absf %10 : vector<16x256xf32>
    %cst_8 = arith.constant 0.327591091 : f32
    %12 = vector.broadcast %cst_8 : f32 to vector<16x256xf32>
    %13 = arith.mulf %12, %11 : vector<16x256xf32>
    %cst_9 = arith.constant 1.000000e+00 : f32
    %14 = vector.broadcast %cst_9 : f32 to vector<16x256xf32>
    %15 = arith.addf %14, %13 : vector<16x256xf32>
    %cst_10 = arith.constant 1.000000e+00 : f32
    %16 = vector.broadcast %cst_10 : f32 to vector<16x256xf32>
    %17 = arith.divf %16, %15 : vector<16x256xf32>
    %cst_11 = arith.constant 1.06140542 : f32
    %18 = vector.broadcast %cst_11 : f32 to vector<16x256xf32>
    %19 = arith.mulf %17, %18 : vector<16x256xf32>
    %cst_12 = arith.constant -1.45315206 : f32
    %20 = vector.broadcast %cst_12 : f32 to vector<16x256xf32>
    %21 = arith.addf %20, %19 : vector<16x256xf32>
    %22 = arith.mulf %17, %21 : vector<16x256xf32>
    %cst_13 = arith.constant 1.42141378 : f32
    %23 = vector.broadcast %cst_13 : f32 to vector<16x256xf32>
    %24 = arith.addf %23, %22 : vector<16x256xf32>
    %25 = arith.mulf %17, %24 : vector<16x256xf32>
    %cst_14 = arith.constant -0.284496725 : f32
    %26 = vector.broadcast %cst_14 : f32 to vector<16x256xf32>
    %27 = arith.addf %26, %25 : vector<16x256xf32>
    %28 = arith.mulf %17, %27 : vector<16x256xf32>
    %cst_15 = arith.constant 0.254829586 : f32
    %29 = vector.broadcast %cst_15 : f32 to vector<16x256xf32>
    %30 = arith.addf %29, %28 : vector<16x256xf32>
    %31 = arith.mulf %17, %30 : vector<16x256xf32>
    %cst_16 = arith.constant 0.000000e+00 : f32
    %32 = vector.broadcast %cst_16 : f32 to vector<16x256xf32>
    %33 = arith.subf %32, %11 : vector<16x256xf32>
    %34 = arith.mulf %33, %11 : vector<16x256xf32>
    %35 = math.exp %34 : vector<16x256xf32>
    %36 = arith.mulf %31, %35 : vector<16x256xf32>
    %cst_17 = arith.constant 1.000000e+00 : f32
    %37 = vector.broadcast %cst_17 : f32 to vector<16x256xf32>
    %38 = arith.subf %37, %36 : vector<16x256xf32>
    %cst_18 = arith.constant 0.000000e+00 : f32
    %39 = vector.broadcast %cst_18 : f32 to vector<16x256xf32>
    %40 = arith.cmpf olt, %10, %39 : vector<16x256xf32>
    %cst_19 = arith.constant 0.000000e+00 : f32
    %41 = vector.broadcast %cst_19 : f32 to vector<16x256xf32>
    %42 = arith.subf %41, %38 : vector<16x256xf32>
    %43 = arith.select %40, %42, %38 : vector<16x256xi1>, vector<16x256xf32>
    %cst_20 = arith.constant 1.000000e+00 : f32
    %44 = vector.broadcast %cst_20 : f32 to vector<16x256xf32>
    %45 = arith.addf %44, %43 : vector<16x256xf32>
    %46 = arith.mulf %8, %45 : vector<16x256xf32>
    %c0_21 = arith.constant 0 : index
    %c0_22 = arith.constant 0 : index
    %47 = vector.load %arg4[%c0_21, %c0_22] : memref<256x128xf32, #tpu.memory_space<vmem>>, vector<256x128xf32>
    %cst_23 = arith.constant dense<0.000000e+00> : vector<16x128xf32>
    %48 = tpu.matmul %46, %47, %cst_23 {dimension_numbers = #tpu.dot_dimension_numbers<[1], [0], [0], [1], [0, 0, 1, 1], [], []>} : vector<16x256xf32>, vector<256x128xf32>, vector<16x128xf32> -> vector<16x128xf32>
    %49 = arith.addf %1, %48 : vector<16x128xf32>
    %c0_24 = arith.constant 0 : index
    %c0_25 = arith.constant 0 : index
    %50 = vector.load %arg5[%c0_24, %c0_25] : memref<1x128xf32, #tpu.memory_space<vmem>>, vector<1x128xf32>
    %51 = vector.broadcast %50 : vector<1x128xf32> to vector<16x128xf32>
    %52 = arith.addf %49, %51 : vector<16x128xf32>
    %c0_26 = arith.constant 0 : index
    %c0_27 = arith.constant 0 : index
    %53 = vector.load %arg6[%c0_26, %c0_27] : memref<16x128xf32, #tpu.memory_space<vmem>>, vector<16x128xf32>
    tpu.vector_store %arg6[%c0_26, %c0_27], %52 {strides = array<i32>} : memref<16x128xf32, #tpu.memory_space<vmem>>, vector<16x128xf32>,
    return
  }
  func.func @transform_0(%arg0: i32) -> (i32, i32) {
    %c0_i32 = arith.constant 0 : i32
    %c0_i32_0 = arith.constant 0 : i32
    return %arg0, %c0_i32 : i32, i32
  }
  func.func @transform_1(%arg0: i32) -> (i32, i32) {
    %c0_i32 = arith.constant 0 : i32
    %c0_i32_0 = arith.constant 0 : i32
    %c0_i32_1 = arith.constant 0 : i32
    return %c0_i32, %c0_i32_0 : i32, i32
  }
  func.func @transform_2(%arg0: i32) -> (i32, i32) {
    %c0_i32 = arith.constant 0 : i32
    %c0_i32_0 = arith.constant 0 : i32
    %c0_i32_1 = arith.constant 0 : i32
    return %c0_i32, %c0_i32_0 : i32, i32
  }
  func.func @transform_3(%arg0: i32) -> (i32, i32) {
    %c0_i32 = arith.constant 0 : i32
    %c0_i32_0 = arith.constant 0 : i32
    %c0_i32_1 = arith.constant 0 : i32
    return %c0_i32, %c0_i32_0 : i32, i32
  }
  func.func @transform_4(%arg0: i32) -> (i32, i32) {
    %c0_i32 = arith.constant 0 : i32
    %c0_i32_0 = arith.constant 0 : i32
    %c0_i32_1 = arith.constant 0 : i32
    return %c0_i32, %c0_i32_0 : i32, i32
  }
  func.func @transform_5(%arg0: i32) -> (i32, i32) {
    %c0_i32 = arith.constant 0 : i32
    %c0_i32_0 = arith.constant 0 : i32
    return %arg0, %c0_i32 : i32, i32
  }
}

</mosaic_0001>

<llo_original>
// kernel: tpu_custom_call.1
$region0: #{tpu_custom_call.1}
  #allocation0 [shape = 'u32[]', space=smem, size = 0x4, offset = 0x4, fixed_abs, tag = 'smem constant byte address 0x4 - core index']
  #allocation1 [shape = 'u32[144,128]{1,0:T(1,128)}', space=vmem, size = 0x12000, scoped, tag = 'internal scratch']
  %s0 = inlined_call_operand.hbm [shape: f32[16,128], index: 0, kind: input, shape index: {}]
  %s1 = inlined_call_operand.hbm [shape: f32[128,256], index: 1, kind: input, shape index: {}]
  %s2 = inlined_call_operand.vmem [shape: f32[1,256], index: 2, kind: input, shape index: {}]
  %s3 = inlined_call_operand.hbm [shape: f32[256,128], index: 3, kind: input, shape index: {}]
  %s4 = inlined_call_operand.vmem [shape: f32[1,128], index: 4, kind: input, shape index: {}]
  %s5 = inlined_call_operand.hbm [shape: f32[16,128], index: 5, kind: output, shape index: {}]
  %s6 = sld [smem:[#allocation0]]
  $region42: #{tpu_custom_call.1} parent=0
    _
  %s8 = ssub.s32 1, %s6
  %s9 = scalar_select 0, %s8, %s6
  $region1: #{tpu_custom_call.1} parent=0
    #allocation2 [shape = 'u8[8192]{0}', space=vmem, size = 0x2000, scoped, tag = 'input window, operand 0, single buffered']
    #allocation3 [shape = 's32[1]{0}', space=sflag, size = 0x4, scoped, tag = 'scoped memory for tpu_custom_call.1']
    #allocation4 [shape = 's32[1]{0}', space=sflag, size = 0x4, scoped, tag = 'scoped memory for tpu_custom_call.1']
    #allocation5 [shape = 'u8[131072]{0}', space=vmem, size = 0x20000, scoped, tag = 'input window, operand 1, single buffered']
    #allocation6 [shape = 's32[1]{0}', space=sflag, size = 0x4, scoped, tag = 'scoped memory for tpu_custom_call.1']
    #allocation7 [shape = 'u8[131072]{0}', space=vmem, size = 0x20000, scoped, tag = 'input window, operand 3, single buffered']
    #allocation8 [shape = 'u8[8192]{0}', space=vmem, size = 0x2000, scoped, tag = 'output window, operand 0, single buffered']
    %10 = vsyncpa [#allocation3], 0
    %11 = vsyncpa [#allocation6], 0
    %12 = vsyncpa [#allocation4], 0
    // Predicated region
    $region2: #{tpu_custom_call.1} parent=1 // pred_check
      _
    $region3: #{tpu_custom_call.1} parent=1 // pred_check_branch
      %14 = sbr.rel (0) target = $region5
    $region4: #{tpu_custom_call.1} parent=1 // pred_region
      %s16 = ssub.s32 256, 256
      %17 = vsyncadd [#allocation3], %s16
      %s18 = sshll.u32 [#allocation2], 4
      %s19 = int_to_ptr.vmem [resolvable:$true] %s18
      %24 = dma.hbm_to_vmem [thread:$0]  %s0, 256, %s19, [#allocation3], 128, 128, 8
    $region5: #{tpu_custom_call.1} parent=1 // pred_fallthru
      _
    // Predicated region
    $region6: #{tpu_custom_call.1} parent=1 // pred_check
      _
    $region7: #{tpu_custom_call.1} parent=1 // pred_check_branch
      %26 = sbr.rel (0) target = $region9
    $region8: #{tpu_custom_call.1} parent=1 // pred_region
      %s28 = ssub.s32 4096, 4096
      %29 = vsyncadd [#allocation6], %s28
      %s30 = sshll.u32 [#allocation5], 4
      %s31 = int_to_ptr.vmem [resolvable:$true] %s30
      %36 = dma.hbm_to_vmem [thread:$0]  %s1, 4096, %s31, [#allocation6], 256, 256, 16
    $region9: #{tpu_custom_call.1} parent=1 // pred_fallthru
      _
    // Predicated region
    $region10: #{tpu_custom_call.1} parent=1 // pred_check
      _
    $region11: #{tpu_custom_call.1} parent=1 // pred_check_branch
      %38 = sbr.rel (0) target = $region13
    $region12: #{tpu_custom_call.1} parent=1 // pred_region
      _
    $region13: #{tpu_custom_call.1} parent=1 // pred_fallthru
      _
    // Predicated region
    $region14: #{tpu_custom_call.1} parent=1 // pred_check
      _
    $region15: #{tpu_custom_call.1} parent=1 // pred_check_branch
      %40 = sbr.rel (0) target = $region17
    $region16: #{tpu_custom_call.1} parent=1 // pred_region
      %s42 = ssub.s32 4096, 4096
      %43 = vsyncadd [#allocation6], %s42
      %s44 = sshll.u32 [#allocation7], 4
      %s45 = int_to_ptr.vmem [resolvable:$true] %s44
      %50 = dma.hbm_to_vmem [thread:$0]  %s3, 4096, %s45, [#allocation6], 128, 128, 8
    $region17: #{tpu_custom_call.1} parent=1 // pred_fallthru
      _
    // Predicated region
    $region18: #{tpu_custom_call.1} parent=1 // pred_check
      _
    $region19: #{tpu_custom_call.1} parent=1 // pred_check_branch
      %52 = sbr.rel (0) target = $region21
    $region20: #{tpu_custom_call.1} parent=1 // pred_region
      _
    $region21: #{tpu_custom_call.1} parent=1 // pred_fallthru
      _
    // Predicated region
    $region22: #{tpu_custom_call.1} parent=1 // pred_check
      _
    $region23: #{tpu_custom_call.1} parent=1 // pred_check_branch
      %54 = sbr.rel (0) target = $region25
    $region24: #{tpu_custom_call.1} parent=1 // pred_region
      %55 = dma.done [#allocation3], 256
    $region25: #{tpu_custom_call.1} parent=1 // pred_fallthru
      _
    // Predicated region
    $region26: #{tpu_custom_call.1} parent=1 // pred_check
      _
    $region27: #{tpu_custom_call.1} parent=1 // pred_check_branch
      %57 = sbr.rel (0) target = $region29
    $region28: #{tpu_custom_call.1} parent=1 // pred_region
      %58 = dma.done [#allocation6], 4096
    $region29: #{tpu_custom_call.1} parent=1 // pred_fallthru
      _
    // Predicated region
    $region30: #{tpu_custom_call.1} parent=1 // pred_check
      _
    $region31: #{tpu_custom_call.1} parent=1 // pred_check_branch
      %60 = sbr.rel (0) target = $region33
    $region32: #{tpu_custom_call.1} parent=1 // pred_region
      %61 = dma.done [#allocation6], 4096
    $region33: #{tpu_custom_call.1} parent=1 // pred_fallthru
      _
    %v62 = vld [vmem:[#allocation2] sm:$0xff]
    %v63 = vld [vmem:[#allocation2 + $0x8] sm:$0xff]
    %v64 = vld [vmem:[#allocation5] sm:$0xff]
    %v65 = vld [vmem:[#allocation5 + $0x8] sm:$0xff]
    %v66 = vld [vmem:[#allocation5 + $0x10] sm:$0xff]
    %v67 = vld [vmem:[#allocation5 + $0x18] sm:$0xff]
    %v68 = vld [vmem:[#allocation5 + $0x20] sm:$0xff]
    %v69 = vld [vmem:[#allocation5 + $0x28] sm:$0xff]
    %v70 = vld [vmem:[#allocation5 + $0x30] sm:$0xff]
    %v71 = vld [vmem:[#allocation5 + $0x38] sm:$0xff]
    %v72 = vld [vmem:[#allocation5 + $0x40] sm:$0xff]
    %v73 = vld [vmem:[#allocation5 + $0x48] sm:$0xff]
    %v74 = vld [vmem:[#allocation5 + $0x50] sm:$0xff]
    %v75 = vld [vmem:[#allocation5 + $0x58] sm:$0xff]
    %v76 = vld [vmem:[#allocation5 + $0x60] sm:$0xff]
    %v77 = vld [vmem:[#allocation5 + $0x68] sm:$0xff]
    %v78 = vld [vmem:[#allocation5 + $0x70] sm:$0xff]
    %v79 = vld [vmem:[#allocation5 + $0x78] sm:$0xff]
    %v80 = vld [vmem:[#allocation5 + $0x80] sm:$0xff]
    %v81 = vld [vmem:[#allocation5 + $0x88] sm:$0xff]
    %v82 = vld [vmem:[#allocation5 + $0x90] sm:$0xff]
    %v83 = vld [vmem:[#allocation5 + $0x98] sm:$0xff]
    %v84 = vld [vmem:[#allocation5 + $0xa0] sm:$0xff]
    %v85 = vld [vmem:[#allocation5 + $0xa8] sm:$0xff]
    %v86 = vld [vmem:[#allocation5 + $0xb0] sm:$0xff]
    %v87 = vld [vmem:[#allocation5 + $0xb8] sm:$0xff]
    %v88 = vld [vmem:[#allocation5 + $0xc0] sm:$0xff]
    %v89 = vld [vmem:[#allocation5 + $0xc8] sm:$0xff]
    %v90 = vld [vmem:[#allocation5 + $0xd0] sm:$0xff]
    %v91 = vld [vmem:[#allocation5 + $0xd8] sm:$0xff]
    %v92 = vld [vmem:[#allocation5 + $0xe0] sm:$0xff]
    %v93 = vld [vmem:[#allocation5 + $0xe8] sm:$0xff]
    %v94 = vld [vmem:[#allocation5 + $0xf0] sm:$0xff]
    %v95 = vld [vmem:[#allocation5 + $0xf8] sm:$0xff]
    %v96 = vld [vmem:[%s2] sm:$0x3]
    %v98 = vlaneseq
    %v99 = vshrl.u32 %v98, 7
    %v100 = vsub.s32 0, %v99
    %v101 = vrot.slane %v96, %v100
    %v102 = vlaneseq
    %v103 = vshrl.u32 %v102, 7
    %v104 = vsub.s32 1, %v103
    %v105 = vrot.slane %v96, %v104
    %108 = vmatprep.subr.mxu0 %v95
    %109 = vmatpush1.msra.mxu0 %v94
    %110 = vmatprep.subr.mxu0 %v93
    %111 = vmatpush1.msra.mxu0 %v92
    %112 = vmatprep.subr.mxu0 %v91
    %113 = vmatpush1.msra.mxu0 %v90
    %114 = vmatprep.subr.mxu0 %v89
    %115 = vmatpush1.msra.mxu0 %v88
    %116 = vmatprep.subr.mxu0 %v87
    %117 = vmatpush1.msra.mxu0 %v86
    %118 = vmatprep.subr.mxu0 %v85
    %119 = vmatpush1.msra.mxu0 %v84
    %120 = vmatprep.subr.mxu0 %v83
    %121 = vmatpush1.msra.mxu0 %v82
    %122 = vmatprep.subr.mxu0 %v81
    %123 = vmatpush1.msra.mxu0 %v80
    %124 = vmatprep.subr.mxu0 %v79
    %125 = vmatpush1.msra.mxu0 %v78
    %126 = vmatprep.subr.mxu0 %v77
    %127 = vmatpush1.msra.mxu0 %v76
    %128 = vmatprep.subr.mxu0 %v75
    %129 = vmatpush1.msra.mxu0 %v74
    %130 = vmatprep.subr.mxu0 %v73
    %131 = vmatpush1.msra.mxu0 %v72
    %132 = vmatprep.subr.mxu0 %v71
    %133 = vmatpush1.msra.mxu0 %v70
    %134 = vmatprep.subr.mxu0 %v69
    %135 = vmatpush1.msra.mxu0 %v68
    %136 = vmatprep.subr.mxu0 %v67
    %137 = vmatpush1.msra.mxu0 %v66
    %138 = vmatprep.subr.mxu0 %v65
    %139 = vmatpush1.msra.mxu0 %v64
    %140 = vmatprep.subr.mxu0 0.0
    %141 = vmatpush2.msra.mxu0 0.0
    %142 = vmatprep.subr.mxu0 0.0
    %143 = vmatpush2.msra.mxu0 0.0
    %144 = vmatprep.subr.mxu0 0.0
    %145 = vmatpush2.msra.mxu0 0.0
    %146 = vmatprep.subr.mxu0 0.0
    %147 = vmatpush2.msra.mxu0 0.0
    %148 = vmatprep.subr.mxu0 0.0
    %149 = vmatpush2.msra.mxu0 0.0
    %150 = vmatprep.subr.mxu0 0.0
    %151 = vmatpush2.msra.mxu0 0.0
    %152 = vmatprep.subr.mxu0 0.0
    %153 = vmatpush2.msra.mxu0 0.0
    %154 = vmatprep.subr.mxu0 0.0
    %155 = vmatpush2.msra.mxu0 0.0
    %156 = vmatprep.subr.mxu0 0.0
    %157 = vmatpush2.msra.mxu0 0.0
    %158 = vmatprep.subr.mxu0 0.0
    %159 = vmatpush2.msra.mxu0 0.0
    %160 = vmatprep.subr.mxu0 0.0
    %161 = vmatpush2.msra.mxu0 0.0
    %162 = vmatprep.subr.mxu0 0.0
    %163 = vmatpush2.msra.mxu0 0.0
    %164 = vmatprep.subr.mxu0 0.0
    %165 = vmatpush2.msra.mxu0 0.0
    %166 = vmatprep.subr.mxu0 0.0
    %167 = vmatpush2.msra.mxu0 0.0
    %168 = vmatprep.subr.mxu0 0.0
    %169 = vmatpush2.msra.mxu0 0.0
    %170 = vmatprep.subr.mxu0 0.0
    %171 = vmatpush2.msra.mxu0 0.0
    %172 = vmatprep.mubr.f32.mxu0 0.0
    %173 = vmatmul.mubr.f32.gmra.mxu0 %v62
    %v174 = vpop.f32.mrf.mxu0
    %v175 = vadd.f32 %v101, %v174
    %v176 = vpop.f32.mrf.mxu0
    %v177 = vadd.f32 %v105, %v176
    %178 = vmatprep.mubr.f32.mxu0 0.0
    %179 = vmatmul.mubr.f32.gmra.mxu0 %v63
    %v180 = vpop.f32.mrf.mxu0
    %v181 = vadd.f32 %v101, %v180
    %v182 = vpop.f32.mrf.mxu0
    %v183 = vadd.f32 %v105, %v182
    %184 = vdwg.mxu0
    %v185 = vmul.f32 %v175, 0.5
    %v186 = vmul.f32 %v177, 0.5
    %v187 = vmul.f32 %v181, 0.5
    %v188 = vmul.f32 %v183, 0.5
    %v189 = vmul.f32 %v175, 0.70710677
    %v190 = vmul.f32 %v177, 0.70710677
    %v191 = vmul.f32 %v181, 0.70710677
    %v192 = vmul.f32 %v183, 0.70710677
    %v193 = vand.u32 2147483647, %v189
    %v194 = vand.u32 2147483647, %v190
    %v195 = vand.u32 2147483647, %v191
    %v196 = vand.u32 2147483647, %v192
    %v197 = vmul.f32 %v193, 0.3275911
    %v198 = vmul.f32 %v194, 0.3275911
    %v199 = vmul.f32 %v195, 0.3275911
    %v200 = vmul.f32 %v196, 0.3275911
    %v201 = vadd.f32 %v197, 1.0
    %v202 = vadd.f32 %v198, 1.0
    %v203 = vadd.f32 %v199, 1.0
    %v204 = vadd.f32 %v200, 1.0
    %v205 = vrcp.pop %v201
    %v206 = vmul.f32 1.0, %v205
    %v207 = vrcp.pop %v202
    %v208 = vmul.f32 1.0, %v207
    %v209 = vrcp.pop %v203
    %v210 = vmul.f32 1.0, %v209
    %v211 = vrcp.pop %v204
    %v212 = vmul.f32 1.0, %v211
    %v213 = vmul.f32 %v206, 1.0614054
    %v214 = vmul.f32 %v208, 1.0614054
    %v215 = vmul.f32 %v210, 1.0614054
    %v216 = vmul.f32 %v212, 1.0614054
    %v217 = vadd.f32 %v213, -1.4531521
    %v218 = vadd.f32 %v214, -1.4531521
    %v219 = vadd.f32 %v215, -1.4531521
    %v220 = vadd.f32 %v216, -1.4531521
    %v221 = vmul.f32 %v206, %v217
    %v222 = vmul.f32 %v208, %v218
    %v223 = vmul.f32 %v210, %v219
    %v224 = vmul.f32 %v212, %v220
    %v225 = vadd.f32 %v221, 1.4214138
    %v226 = vadd.f32 %v222, 1.4214138
    %v227 = vadd.f32 %v223, 1.4214138
    %v228 = vadd.f32 %v224, 1.4214138
    %v229 = vmul.f32 %v206, %v225
    %v230 = vmul.f32 %v208, %v226
    %v231 = vmul.f32 %v210, %v227
    %v232 = vmul.f32 %v212, %v228
    %v233 = vadd.f32 %v229, -0.28449672
    %v234 = vadd.f32 %v230, -0.28449672
    %v235 = vadd.f32 %v231, -0.28449672
    %v236 = vadd.f32 %v232, -0.28449672
    %v237 = vmul.f32 %v206, %v233
    %v238 = vmul.f32 %v208, %v234
    %v239 = vmul.f32 %v210, %v235
    %v240 = vmul.f32 %v212, %v236
    %v241 = vadd.f32 %v237, 0.2548296
    %v242 = vadd.f32 %v238, 0.2548296
    %v243 = vadd.f32 %v239, 0.2548296
    %v244 = vadd.f32 %v240, 0.2548296
    %v245 = vmul.f32 %v206, %v241
    %v246 = vmul.f32 %v208, %v242
    %v247 = vmul.f32 %v210, %v243
    %v248 = vmul.f32 %v212, %v244
    %v249 = vsub.f32 0.0, %v193
    %v250 = vsub.f32 0.0, %v194
    %v251 = vsub.f32 0.0, %v195
    %v252 = vsub.f32 0.0, %v196
    %v253 = vmul.f32 %v249, %v193
    %v254 = vmul.f32 %v250, %v194
    %v255 = vmul.f32 %v251, %v195
    %v256 = vmul.f32 %v252, %v196
    %v257 = vmul.f32 %v253, 1.442695
    %v258 = vpow.pop %v257
    %v259 = vmul.f32 %v254, 1.442695
    %v260 = vpow.pop %v259
    %v261 = vmul.f32 %v255, 1.442695
    %v262 = vpow.pop %v261
    %v263 = vmul.f32 %v256, 1.442695
    %v264 = vpow.pop %v263
    %v265 = vmul.f32 %v245, %v258
    %v266 = vmul.f32 %v246, %v260
    %v267 = vmul.f32 %v247, %v262
    %v268 = vmul.f32 %v248, %v264
    %v269 = vsub.f32 1.0, %v265
    %v270 = vsub.f32 1.0, %v266
    %v271 = vsub.f32 1.0, %v267
    %v272 = vsub.f32 1.0, %v268
    %vm273 = vcmp.lt.f32.partialorder %v189, 0.0
    %vm274 = vcmp.lt.f32.partialorder %v190, 0.0
    %vm275 = vcmp.lt.f32.partialorder %v191, 0.0
    %vm276 = vcmp.lt.f32.partialorder %v192, 0.0
    %v277 = vsub.f32 0.0, %v269
    %v278 = vsub.f32 0.0, %v270
    %v279 = vsub.f32 0.0, %v271
    %v280 = vsub.f32 0.0, %v272
    %v281 = vsel %vm273, %v277, %v269
    %v282 = vsel %vm274, %v278, %v270
    %v283 = vsel %vm275, %v279, %v271
    %v284 = vsel %vm276, %v280, %v272
    %v285 = vadd.f32 %v281, 1.0
    %v286 = vadd.f32 %v282, 1.0
    %v287 = vadd.f32 %v283, 1.0
    %v288 = vadd.f32 %v284, 1.0
    %v289 = vmul.f32 %v185, %v285
    %v290 = vmul.f32 %v186, %v286
    %v291 = vmul.f32 %v187, %v287
    %v292 = vmul.f32 %v188, %v288
    %v293 = vld [vmem:[#allocation7] sm:$0xff]
    %v294 = vld [vmem:[#allocation7 + $0x8] sm:$0xff]
    %v295 = vld [vmem:[#allocation7 + $0x10] sm:$0xff]
    %v296 = vld [vmem:[#allocation7 + $0x18] sm:$0xff]
    %v297 = vld [vmem:[#allocation7 + $0x20] sm:$0xff]
    %v298 = vld [vmem:[#allocation7 + $0x28] sm:$0xff]
    %v299 = vld [vmem:[#allocation7 + $0x30] sm:$0xff]
    %v300 = vld [vmem:[#allocation7 + $0x38] sm:$0xff]
    %v301 = vld [vmem:[#allocation7 + $0x40] sm:$0xff]
    %v302 = vld [vmem:[#allocation7 + $0x48] sm:$0xff]
    %v303 = vld [vmem:[#allocation7 + $0x50] sm:$0xff]
    %v304 = vld [vmem:[#allocation7 + $0x58] sm:$0xff]
    %v305 = vld [vmem:[#allocation7 + $0x60] sm:$0xff]
    %v306 = vld [vmem:[#allocation7 + $0x68] sm:$0xff]
    %v307 = vld [vmem:[#allocation7 + $0x70] sm:$0xff]
    %v308 = vld [vmem:[#allocation7 + $0x78] sm:$0xff]
    %v309 = vld [vmem:[#allocation7 + $0x80] sm:$0xff]
    %v310 = vld [vmem:[#allocation7 + $0x88] sm:$0xff]
    %v311 = vld [vmem:[#allocation7 + $0x90] sm:$0xff]
    %v312 = vld [vmem:[#allocation7 + $0x98] sm:$0xff]
    %v313 = vld [vmem:[#allocation7 + $0xa0] sm:$0xff]
    %v314 = vld [vmem:[#allocation7 + $0xa8] sm:$0xff]
    %v315 = vld [vmem:[#allocation7 + $0xb0] sm:$0xff]
    %v316 = vld [vmem:[#allocation7 + $0xb8] sm:$0xff]
    %v317 = vld [vmem:[#allocation7 + $0xc0] sm:$0xff]
    %v318 = vld [vmem:[#allocation7 + $0xc8] sm:$0xff]
    %v319 = vld [vmem:[#allocation7 + $0xd0] sm:$0xff]
    %v320 = vld [vmem:[#allocation7 + $0xd8] sm:$0xff]
    %v321 = vld [vmem:[#allocation7 + $0xe0] sm:$0xff]
    %v322 = vld [vmem:[#allocation7 + $0xe8] sm:$0xff]
    %v323 = vld [vmem:[#allocation7 + $0xf0] sm:$0xff]
    %v324 = vld [vmem:[#allocation7 + $0xf8] sm:$0xff]
    %v325 = vld [vmem:[%s4] sm:$0x1]
    %v327 = vlaneseq
    %v328 = vshrl.u32 %v327, 7
    %v329 = vsub.s32 0, %v328
    %v330 = vrot.slane %v325, %v329
    %332 = vmatprep.subr.mxu0 0.0
    %333 = vmatpush1.msra.mxu0 %v308
    %334 = vmatprep.subr.mxu0 0.0
    %335 = vmatpush1.msra.mxu0 %v307
    %336 = vmatprep.subr.mxu0 0.0
    %337 = vmatpush1.msra.mxu0 %v306
    %338 = vmatprep.subr.mxu0 0.0
    %339 = vmatpush1.msra.mxu0 %v305
    %340 = vmatprep.subr.mxu0 0.0
    %341 = vmatpush1.msra.mxu0 %v304
    %342 = vmatprep.subr.mxu0 0.0
    %343 = vmatpush1.msra.mxu0 %v303
    %344 = vmatprep.subr.mxu0 0.0
    %345 = vmatpush1.msra.mxu0 %v302
    %346 = vmatprep.subr.mxu0 0.0
    %347 = vmatpush1.msra.mxu0 %v301
    %348 = vmatprep.subr.mxu0 0.0
    %349 = vmatpush1.msra.mxu0 %v300
    %350 = vmatprep.subr.mxu0 0.0
    %351 = vmatpush1.msra.mxu0 %v299
    %352 = vmatprep.subr.mxu0 0.0
    %353 = vmatpush1.msra.mxu0 %v298
    %354 = vmatprep.subr.mxu0 0.0
    %355 = vmatpush1.msra.mxu0 %v297
    %356 = vmatprep.subr.mxu0 0.0
    %357 = vmatpush1.msra.mxu0 %v296
    %358 = vmatprep.subr.mxu0 0.0
    %359 = vmatpush1.msra.mxu0 %v295
    %360 = vmatprep.subr.mxu0 0.0
    %361 = vmatpush1.msra.mxu0 %v294
    %362 = vmatprep.subr.mxu0 0.0
    %363 = vmatpush1.msra.mxu0 %v293
    %364 = vmatprep.subr.mxu0 0.0
    %365 = vmatpush2.msra.mxu0 %v324
    %366 = vmatprep.subr.mxu0 0.0
    %367 = vmatpush2.msra.mxu0 %v323
    %368 = vmatprep.subr.mxu0 0.0
    %369 = vmatpush2.msra.mxu0 %v322
    %370 = vmatprep.subr.mxu0 0.0
    %371 = vmatpush2.msra.mxu0 %v321
    %372 = vmatprep.subr.mxu0 0.0
    %373 = vmatpush2.msra.mxu0 %v320
    %374 = vmatprep.subr.mxu0 0.0
    %375 = vmatpush2.msra.mxu0 %v319
    %376 = vmatprep.subr.mxu0 0.0
    %377 = vmatpush2.msra.mxu0 %v318
    %378 = vmatprep.subr.mxu0 0.0
    %379 = vmatpush2.msra.mxu0 %v317
    %380 = vmatprep.subr.mxu0 0.0
    %381 = vmatpush2.msra.mxu0 %v316
    %382 = vmatprep.subr.mxu0 0.0
    %383 = vmatpush2.msra.mxu0 %v315
    %384 = vmatprep.subr.mxu0 0.0
    %385 = vmatpush2.msra.mxu0 %v314
    %386 = vmatprep.subr.mxu0 0.0
    %387 = vmatpush2.msra.mxu0 %v313
    %388 = vmatprep.subr.mxu0 0.0
    %389 = vmatpush2.msra.mxu0 %v312
    %390 = vmatprep.subr.mxu0 0.0
    %391 = vmatpush2.msra.mxu0 %v311
    %392 = vmatprep.subr.mxu0 0.0
    %393 = vmatpush2.msra.mxu0 %v310
    %394 = vmatprep.subr.mxu0 0.0
    %395 = vmatpush2.msra.mxu0 %v309
    %396 = vmatprep.mubr.f32.mxu0 %v290
    %397 = vmatmul.mubr.f32.gmra.mxu0 %v289
    %v398 = vpop.f32.mrf.mxu0
    %v399 = vadd.f32 %v330, %v398
    %v400 = vpop.f32.mrf.mxu0
    %401 = vmatprep.mubr.f32.mxu0 %v292
    %402 = vmatmul.mubr.f32.gmra.mxu0 %v291
    %v403 = vpop.f32.mrf.mxu0
    %v404 = vadd.f32 %v330, %v403
    %v405 = vpop.f32.mrf.mxu0
    %406 = vdwg.mxu0
    %407 = vst [vmem:[#allocation8] sm:$0xff] %v399
    %408 = vst [vmem:[#allocation8 + $0x8] sm:$0xff] %v404
    // Predicated region
    $region34: #{tpu_custom_call.1} parent=1 // pred_check
      _
    $region35: #{tpu_custom_call.1} parent=1 // pred_check_branch
      %410 = sbr.rel (0) target = $region37
    $region36: #{tpu_custom_call.1} parent=1 // pred_region
      %s412 = ssub.s32 256, 256
      %413 = vsyncadd [#allocation4], %s412
      %s414 = sshll.u32 [#allocation8], 4
      %s415 = int_to_ptr.vmem [resolvable:$true] %s414
      %420 = dma.vmem_to_hbm [thread:$0]  %s415, 256, %s5, [#allocation4], 128, 128, 8
    $region37: #{tpu_custom_call.1} parent=1 // pred_fallthru
      _
    // Predicated region
    $region38: #{tpu_custom_call.1} parent=1 // pred_check
      _
    $region39: #{tpu_custom_call.1} parent=1 // pred_check_branch
      %422 = sbr.rel (0) target = $region41
    $region40: #{tpu_custom_call.1} parent=1 // pred_region
      %423 = dma.done [#allocation4], 256
    $region41: #{tpu_custom_call.1} parent=1 // pred_fallthru
      _
    %424 = vsyncpa [#allocation3], 1
    %425 = vsyncpa [#allocation6], 1
    %426 = vsyncpa [#allocation4], 1

</llo_original>
